<compile_context>
chip_gen: v6e
topology: v6e:2x2x1
jax: 0.10.0
libtpu: 0.0.40
codegen_flags: <defaults>
</compile_context>

<pallas_src>
import functools

import numpy as np
import jax
import jax.numpy as jnp
from jax.experimental import pallas as pl
from jax.experimental.pallas import tpu as pltpu


def _chip_params():
    """(target_lanes, num_tensorcores) from the attached TPU generation."""
    lanes, cores = 256, 1
    try:
        kind = jax.devices()[0].device_kind.lower()
    except Exception:
        return lanes, cores
    # 128x128 MXU generations -> keep the right operator to a single MXU tile.
    if any(tag in kind for tag in ("v2", "v3", "v4", "v5")):
        lanes = 128
    # v7x has 2 TensorCores per chip -> want a parallel grid of >= 2 steps.
    if "v7" in kind or "7x" in kind:
        cores = 2
    return lanes, cores


def _choose_lane_batch(num_planes, W, target_lanes, min_grid=1):
    """Largest divisor Bc of num_planes with Bc*W <= max(target_lanes, W),
    additionally keeping num_planes/Bc >= min_grid when possible."""
    best = 1
    for d in range(1, num_planes + 1):
        if num_planes % d:
            continue
        if d * W > max(target_lanes, W):
            continue
        if d > 1 and num_planes // d < min_grid:
            continue
        best = d
    return best


def _make_composite_operators(H, W, Bc):
    """Host-precomposed pyramid operators.

    Returns (lstack, rstack) with
      lstack: (4, H, H)        -- composite left ops L_i
      rstack: (4*Bc*W, Bc*W)   -- vstack of block-diagonalized right ops R_i
    such that  filtered2 = sum_i L_i @ d @ R_i  for a lane-packed slab d.
    """
    cv = np.array([1, 1, 2, 1, 1], np.float32)   # k_v = cv (col) x rv (row)
    rv = np.array([1, 0, 0, 0, -1], np.float32)
    ch = np.array([-1, 0, 0, 0, 1], np.float32)  # k_h = ch x rh
    rh = np.array([1, 1, 2, 1, 1], np.float32)

    def left_op(n, taps):
        # (L @ img)[i, j] = sum_u taps[u] * img[clip(i+u-2), j]
        A = np.zeros((n, n), np.float32)
        for u, w in enumerate(taps):
            s = u - 2
            for i in range(n):
                A[i, min(max(i + s, 0), n - 1)] += w
        return A

    def right_op(n, taps):
        # (img @ R)[i, j] = sum_v taps[v] * img[i, clip(j+v-2)]
        B = np.zeros((n, n), np.float32)
        for v, w in enumerate(taps):
            s = v - 2
            for j in range(n):
                B[min(max(j + s, 0), n - 1), j] += w
        return B

    # stage 1:  f1 = Lv1 d Rv1 + Lh1 d Rh1   (0.5 folded into the left ops)
    Lv1 = 0.5 * left_op(H, cv)
    Lh1 = 0.5 * left_op(H, ch)
    Rv1 = right_op(W, rv)
    Rh1 = right_op(W, rh)

    # stage 2 on (4 * Dr f1 Dc): fold mask + *4 into the operators
    Dr = np.diag((np.arange(H) % 2 == 0).astype(np.float32))
    Dc = np.diag((np.arange(W) % 2 == 0).astype(np.float32))
    Lv2 = 2.0 * left_op(H, cv) @ Dr          # 0.5 * 4 = 2
    Lh2 = 2.0 * left_op(H, ch) @ Dr
    Rv2 = Dc @ right_op(W, rv)
    Rh2 = Dc @ right_op(W, rh)

    # composite pairs:  f2 = sum_i (Lstage2 Lstage1) d (Rstage1 Rstage2)
    Ls = [Lv2 @ Lv1, Lv2 @ Lh1, Lh2 @ Lv1, Lh2 @ Lh1]
    Rs = [Rv1 @ Rv2, Rh1 @ Rv2, Rv1 @ Rh2, Rh1 @ Rh2]

    eye = np.eye(Bc, dtype=np.float32)
    lstack = np.stack(Ls).astype(np.float32)                       # (4, H, H)
    rstack = np.concatenate([np.kron(eye, R) for R in Rs],
                            axis=0).astype(np.float32)             # (4Wb, Wb)
    return jnp.asarray(lstack), jnp.asarray(rstack)


def _sobel_loss_kernel(lstack_ref, rstack_ref, d_ref, out_ref, cat_ref, *, eps):
    d = d_ref[0]                                      # (H, Wb) f32
    H, Wb = d.shape

    # 4 composite left ops applied to d, packed side-by-side along lanes.
    for i in range(4):
        cat_ref[:, i * Wb:(i + 1) * Wb] = jnp.dot(
            lstack_ref[i], d, preferred_element_type=jnp.float32)

    # single fused right matmul, K = 4*Wb  ->  f2 = sum_i (L_i d) R_i
    f2 = jnp.dot(cat_ref[...], rstack_ref[...],
                 preferred_element_type=jnp.float32)

    r = d - f2
    charb = jnp.sqrt(r * r + eps * eps)

    # lane-dense (Hr, Wb) partial-sum block; final reduce happens in JAX.
    hr = out_ref.shape[1]
    out_ref[0] = jnp.sum(charb.reshape(H // hr, hr, Wb), axis=0)


@functools.partial(jax.jit, static_argnames=("eps",))
def sobel_edge_loss(x, y, eps=1e-3):
    """Pallas TPU implementation of sobel_edge_loss.forward(x, y)."""
    assert x.shape == y.shape
    N, C, H, W = x.shape
    B = N * C

    target_lanes, num_cores = _chip_params()
    min_grid = 2 if (num_cores >= 2 and B >= 2) else 1
    Bc = _choose_lane_batch(B, W, target_lanes, min_grid)   # planes per slab
    G = B // Bc                                             # grid steps
    Wb = Bc * W                                             # slab lane width
    Hr = 8 if H % 8 == 0 else 1                             # partial-sum rows

    lstack, rstack = _make_composite_operators(H, W, Bc)

    # sobel() is linear -> compute the difference once in the wrapper; the
    # subtract fuses into the slab transpose copy.
    d = x.astype(jnp.float32) - y.astype(jnp.float32)
    d = d.reshape(G, Bc, H, W)
    d = jnp.transpose(d, (0, 2, 1, 3)).reshape(G, H, Wb)    # lane-packed slabs

    kernel = functools.partial(_sobel_loss_kernel, eps=float(eps))

    partials = pl.pallas_call(
        kernel,
        out_shape=jax.ShapeDtypeStruct((G, Hr, Wb), jnp.float32),
        grid_spec=pltpu.PrefetchScalarGridSpec(
            num_scalar_prefetch=0,
            grid=(G,),
            in_specs=[
                pl.BlockSpec((4, H, H), lambda i: (0, 0, 0)),      # left ops
                pl.BlockSpec((4 * Wb, Wb), lambda i: (0, 0)),      # fused right
                pl.BlockSpec((1, H, Wb), lambda i: (i, 0, 0)),     # d slab
            ],
            out_specs=pl.BlockSpec((1, Hr, Wb), lambda i: (i, 0, 0)),
            scratch_shapes=[pltpu.VMEM((H, 4 * Wb), jnp.float32)],
        ),
        compiler_params=pltpu.CompilerParams(
            dimension_semantics=("parallel",)),
    )(lstack, rstack, d)

    # Charbonnier mean over all N*C*H*W elements.
    return jnp.sum(partials) * (1.0 / float(N * C * H * W))


if __name__ == "__main__":
    key = jax.random.PRNGKey(0)
    kx, ky = jax.random.split(key)
    # small shapes consistent with the module: batch=2, in_channels=4, 16x16
    x = jax.random.normal(kx, (2, 4, 16, 16), dtype=jnp.float32)
    y = jax.random.normal(ky, (2, 4, 16, 16), dtype=jnp.float32)

    loss = sobel_edge_loss(x, y)
    jax.block_until_ready(loss)
    print("KERNEL_OK")
</pallas_src>

<mosaic_0001>
module attributes {stable_mosaic.version = 11 : i64} {
  func.func @_sobel_loss_kernel(%arg0: i32, %arg1: memref<4x16x16xf32, #tpu.memory_space<vmem>>, %arg2: memref<512x128xf32, #tpu.memory_space<vmem>>, %arg3: memref<1x16x128xf32, #tpu.memory_space<vmem>>, %arg4: memref<1x8x128xf32, #tpu.memory_space<vmem>>, %arg5: memref<16x512xf32, #tpu.memory_space<vmem>>) attributes {dimension_semantics = [#tpu.dimension_semantics<parallel>], iteration_bounds = array<i64: 1>, scalar_prefetch = 0 : i64, scratch_operands = 1 : i64, tpu.core_type = #tpu.core_type<tc>, window_params = [{pipeline_mode = #tpu.pipeline_mode<synchronous>, transform_indices = @transform_0, window_bounds = array<i64: 4, 16, 16>}, {pipeline_mode = #tpu.pipeline_mode<synchronous>, transform_indices = @transform_1, window_bounds = array<i64: 512, 128>}, {transform_indices = @transform_2, window_bounds = array<i64: 1, 16, 128>}, {transform_indices = @transform_3, window_bounds = array<i64: 1, 8, 128>}]} {
    %c0 = arith.constant 0 : index
    %c0_0 = arith.constant 0 : index
    %c0_1 = arith.constant 0 : index
    %0 = vector.load %arg3[%c0, %c0_0, %c0_1] : memref<1x16x128xf32, #tpu.memory_space<vmem>>, vector<1x16x128xf32>
    %1 = vector.shape_cast %0 : vector<1x16x128xf32> to vector<16x128xf32>
    %c0_2 = arith.constant 0 : index
    %c0_3 = arith.constant 0 : index
    %c0_4 = arith.constant 0 : index
    %2 = vector.load %arg1[%c0_2, %c0_3, %c0_4] : memref<4x16x16xf32, #tpu.memory_space<vmem>>, vector<1x16x16xf32>
    %3 = vector.shape_cast %2 : vector<1x16x16xf32> to vector<16x16xf32>
    %cst = arith.constant dense<0.000000e+00> : vector<16x128xf32>
    %4 = tpu.matmul %3, %1, %cst {dimension_numbers = #tpu.dot_dimension_numbers<[1], [0], [0], [1], [0, 0, 1, 1], [], []>} : vector<16x16xf32>, vector<16x128xf32>, vector<16x128xf32> -> vector<16x128xf32>
    %c0_5 = arith.constant 0 : index
    %c0_6 = arith.constant 0 : index
    %5 = vector.load %arg5[%c0_5, %c0_6] : memref<16x512xf32, #tpu.memory_space<vmem>>, vector<16x128xf32>
    tpu.vector_store %arg5[%c0_5, %c0_6], %4 {strides = array<i32>} : memref<16x512xf32, #tpu.memory_space<vmem>>, vector<16x128xf32>,
    %c1 = arith.constant 1 : index
    %c0_7 = arith.constant 0 : index
    %c0_8 = arith.constant 0 : index
    %6 = vector.load %arg1[%c1, %c0_7, %c0_8] : memref<4x16x16xf32, #tpu.memory_space<vmem>>, vector<1x16x16xf32>
    %7 = vector.shape_cast %6 : vector<1x16x16xf32> to vector<16x16xf32>
    %cst_9 = arith.constant dense<0.000000e+00> : vector<16x128xf32>
    %8 = tpu.matmul %7, %1, %cst_9 {dimension_numbers = #tpu.dot_dimension_numbers<[1], [0], [0], [1], [0, 0, 1, 1], [], []>} : vector<16x16xf32>, vector<16x128xf32>, vector<16x128xf32> -> vector<16x128xf32>
    %c0_10 = arith.constant 0 : index
    %c128 = arith.constant 128 : index
    %9 = vector.load %arg5[%c0_10, %c128] : memref<16x512xf32, #tpu.memory_space<vmem>>, vector<16x128xf32>
    tpu.vector_store %arg5[%c0_10, %c128], %8 {strides = array<i32>} : memref<16x512xf32, #tpu.memory_space<vmem>>, vector<16x128xf32>,
    %c2 = arith.constant 2 : index
    %c0_11 = arith.constant 0 : index
    %c0_12 = arith.constant 0 : index
    %10 = vector.load %arg1[%c2, %c0_11, %c0_12] : memref<4x16x16xf32, #tpu.memory_space<vmem>>, vector<1x16x16xf32>
    %11 = vector.shape_cast %10 : vector<1x16x16xf32> to vector<16x16xf32>
    %cst_13 = arith.constant dense<0.000000e+00> : vector<16x128xf32>
    %12 = tpu.matmul %11, %1, %cst_13 {dimension_numbers = #tpu.dot_dimension_numbers<[1], [0], [0], [1], [0, 0, 1, 1], [], []>} : vector<16x16xf32>, vector<16x128xf32>, vector<16x128xf32> -> vector<16x128xf32>
    %c0_14 = arith.constant 0 : index
    %c256 = arith.constant 256 : index
    %13 = vector.load %arg5[%c0_14, %c256] : memref<16x512xf32, #tpu.memory_space<vmem>>, vector<16x128xf32>
    tpu.vector_store %arg5[%c0_14, %c256], %12 {strides = array<i32>} : memref<16x512xf32, #tpu.memory_space<vmem>>, vector<16x128xf32>,
    %c3 = arith.constant 3 : index
    %c0_15 = arith.constant 0 : index
    %c0_16 = arith.constant 0 : index
    %14 = vector.load %arg1[%c3, %c0_15, %c0_16] : memref<4x16x16xf32, #tpu.memory_space<vmem>>, vector<1x16x16xf32>
    %15 = vector.shape_cast %14 : vector<1x16x16xf32> to vector<16x16xf32>
    %cst_17 = arith.constant dense<0.000000e+00> : vector<16x128xf32>
    %16 = tpu.matmul %15, %1, %cst_17 {dimension_numbers = #tpu.dot_dimension_numbers<[1], [0], [0], [1], [0, 0, 1, 1], [], []>} : vector<16x16xf32>, vector<16x128xf32>, vector<16x128xf32> -> vector<16x128xf32>
    %c0_18 = arith.constant 0 : index
    %c384 = arith.constant 384 : index
    %17 = vector.load %arg5[%c0_18, %c384] : memref<16x512xf32, #tpu.memory_space<vmem>>, vector<16x128xf32>
    tpu.vector_store %arg5[%c0_18, %c384], %16 {strides = array<i32>} : memref<16x512xf32, #tpu.memory_space<vmem>>, vector<16x128xf32>,
    %c0_19 = arith.constant 0 : index
    %c0_20 = arith.constant 0 : index
    %18 = vector.load %arg5[%c0_19, %c0_20] : memref<16x512xf32, #tpu.memory_space<vmem>>, vector<16x512xf32>
    %c0_21 = arith.constant 0 : index
    %c0_22 = arith.constant 0 : index
    %19 = vector.load %arg2[%c0_21, %c0_22] : memref<512x128xf32, #tpu.memory_space<vmem>>, vector<512x128xf32>
    %cst_23 = arith.constant dense<0.000000e+00> : vector<16x128xf32>
    %20 = tpu.matmul %18, %19, %cst_23 {dimension_numbers = #tpu.dot_dimension_numbers<[1], [0], [0], [1], [0, 0, 1, 1], [], []>} : vector<16x512xf32>, vector<512x128xf32>, vector<16x128xf32> -> vector<16x128xf32>
    %21 = arith.subf %1, %20 : vector<16x128xf32>
    %22 = arith.mulf %21, %21 : vector<16x128xf32>
    %cst_24 = arith.constant 9.99999997E-7 : f32
    %23 = vector.broadcast %cst_24 : f32 to vector<16x128xf32>
    %24 = arith.addf %22, %23 : vector<16x128xf32>
    %25 = math.sqrt %24 : vector<16x128xf32>
    %26 = vector.shape_cast %25 : vector<16x128xf32> to vector<2x8x128xf32>
    %cst_25 = arith.constant dense<0.000000e+00> : vector<8x128xf32>
    %27 = vector.multi_reduction <add>, %26, %cst_25 [0] : vector<2x8x128xf32> to vector<8x128xf32>
    %c0_26 = arith.constant 0 : index
    %c0_27 = arith.constant 0 : index
    %c0_28 = arith.constant 0 : index
    %28 = vector.load %arg4[%c0_26, %c0_27, %c0_28] : memref<1x8x128xf32, #tpu.memory_space<vmem>>, vector<1x8x128xf32>
    %29 = vector.shape_cast %28 : vector<1x8x128xf32> to vector<8x128xf32>
    %30 = vector.shape_cast %27 : vector<8x128xf32> to vector<1x8x128xf32>
    tpu.vector_store %arg4[%c0_26, %c0_27, %c0_28], %30 {strides = array<i32>} : memref<1x8x128xf32, #tpu.memory_space<vmem>>, vector<1x8x128xf32>,
    return
  }
  func.func @transform_0(%arg0: i32) -> (i32, i32, i32) {
    %c0_i32 = arith.constant 0 : i32
    %c0_i32_0 = arith.constant 0 : i32
    %c0_i32_1 = arith.constant 0 : i32
    %c0_i32_2 = arith.constant 0 : i32
    return %c0_i32, %c0_i32_0, %c0_i32_1 : i32, i32, i32
  }
  func.func @transform_1(%arg0: i32) -> (i32, i32) {
    %c0_i32 = arith.constant 0 : i32
    %c0_i32_0 = arith.constant 0 : i32
    %c0_i32_1 = arith.constant 0 : i32
    return %c0_i32, %c0_i32_0 : i32, i32
  }
  func.func @transform_2(%arg0: i32) -> (i32, i32, i32) {
    %c0_i32 = arith.constant 0 : i32
    %c0_i32_0 = arith.constant 0 : i32
    %c0_i32_1 = arith.constant 0 : i32
    return %arg0, %c0_i32, %c0_i32_0 : i32, i32, i32
  }
  func.func @transform_3(%arg0: i32) -> (i32, i32, i32) {
    %c0_i32 = arith.constant 0 : i32
    %c0_i32_0 = arith.constant 0 : i32
    %c0_i32_1 = arith.constant 0 : i32
    return %arg0, %c0_i32, %c0_i32_0 : i32, i32, i32
  }
}

</mosaic_0001>

<llo_original>
// kernel: sub.1
$region0: #{sub.1}
  #allocation4 [shape = 's32[1]{0}', space=sflag, size = 0x4, scoped, tag = 'scoped memory for sub.1']
  %s0 = inlined_call_operand.hbm [shape: f32[2,4,16,16], index: 0, kind: input, shape index: {}]
  %s1 = inlined_call_operand.hbm [shape: f32[2,4,16,16], index: 1, kind: input, shape index: {}]
  %s2 = inlined_call_operand.vmem [shape: f32[2,4,16,16], index: 2, kind: output, shape index: {}]
  $region1: #{sub.1} parent=0
    #allocation0 [shape = 'u8[65536]{0}', space=vmem, size = 0x10000, scoped, tag = 'operand span for operand 0']
    #allocation1 [shape = 's32[1]{0}', space=sflag, size = 0x4, scoped, tag = 'scoped memory for sub.1']
    #allocation2 [shape = 'u8[65536]{0}', space=vmem, size = 0x10000, scoped, tag = 'operand span for operand 1']
    #allocation3 [shape = 's32[1]{0}', space=sflag, size = 0x4, scoped, tag = 'scoped memory for sub.1']
    %3 = vsyncpa [#allocation1], 0
    %4 = vsyncpa [#allocation3], 0
    %s6 = ssub.s32 2048, 2048
    %7 = vsyncadd [#allocation1], %s6
    %s8 = sshll.u32 [#allocation0], 4
    %s9 = int_to_ptr.vmem [resolvable:$true] %s8
    %14 = dma.hbm_to_vmem [thread:$0]  %s0, 2048, %s9, [#allocation1], 128, 128, 8
    %s16 = ssub.s32 2048, 2048
    %17 = vsyncadd [#allocation3], %s16
    %s18 = sshll.u32 [#allocation2], 4
    %s19 = int_to_ptr.vmem [resolvable:$true] %s18
    %24 = dma.hbm_to_vmem [thread:$0]  %s1, 2048, %s19, [#allocation3], 128, 128, 8
    %25 = dma.done [#allocation1], 2048
    %26 = dma.done [#allocation3], 2048
    %v27 = vld [vmem:[#allocation0] sm:$0xff]
    %v28 = vld [vmem:[#allocation2] sm:$0xff]
    %29 = xla_tuple %v27, %v28
    %30 = xla_tuple %29
    %v31 = vsub.f32 %v27, %v28
    %32 = xla_tuple %v31
    %33 = vst [vmem:[%s2] sm:$0xff] %v31
    %s34 = scalar_lea.vmem [#allocation0], 64
    %v35 = vld [vmem:[%s34] sm:$0xff]
    %s36 = scalar_lea.vmem [#allocation2], 64
    %v37 = vld [vmem:[%s36] sm:$0xff]
    %38 = xla_tuple %v35, %v37
    %39 = xla_tuple %38
    %v40 = vsub.f32 %v35, %v37
    %41 = xla_tuple %v40
    %s42 = scalar_lea.vmem %s2, 64
    %43 = vst [vmem:[%s42] sm:$0xff] %v40
    %s44 = scalar_lea.vmem [#allocation0], 16
    %v45 = vld [vmem:[%s44] sm:$0xff]
    %s46 = scalar_lea.vmem [#allocation2], 16
    %v47 = vld [vmem:[%s46] sm:$0xff]
    %48 = xla_tuple %v45, %v47
    %49 = xla_tuple %48
    %v50 = vsub.f32 %v45, %v47
    %51 = xla_tuple %v50
    %s52 = scalar_lea.vmem %s2, 16
    %53 = vst [vmem:[%s52] sm:$0xff] %v50
    %s54 = scalar_lea.vmem [#allocation0], 80
    %v55 = vld [vmem:[%s54] sm:$0xff]
    %s56 = scalar_lea.vmem [#allocation2], 80
    %v57 = vld [vmem:[%s56] sm:$0xff]
    %58 = xla_tuple %v55, %v57
    %59 = xla_tuple %58
    %v60 = vsub.f32 %v55, %v57
    %61 = xla_tuple %v60
    %s62 = scalar_lea.vmem %s2, 80
    %63 = vst [vmem:[%s62] sm:$0xff] %v60
    %s64 = scalar_lea.vmem [#allocation0], 32
    %v65 = vld [vmem:[%s64] sm:$0xff]
    %s66 = scalar_lea.vmem [#allocation2], 32
    %v67 = vld [vmem:[%s66] sm:$0xff]
    %68 = xla_tuple %v65, %v67
    %69 = xla_tuple %68
    %v70 = vsub.f32 %v65, %v67
    %71 = xla_tuple %v70
    %s72 = scalar_lea.vmem %s2, 32
    %73 = vst [vmem:[%s72] sm:$0xff] %v70
    %s74 = scalar_lea.vmem [#allocation0], 96
    %v75 = vld [vmem:[%s74] sm:$0xff]
    %s76 = scalar_lea.vmem [#allocation2], 96
    %v77 = vld [vmem:[%s76] sm:$0xff]
    %78 = xla_tuple %v75, %v77
    %79 = xla_tuple %78
    %v80 = vsub.f32 %v75, %v77
    %81 = xla_tuple %v80
    %s82 = scalar_lea.vmem %s2, 96
    %83 = vst [vmem:[%s82] sm:$0xff] %v80
    %s84 = scalar_lea.vmem [#allocation0], 48
    %v85 = vld [vmem:[%s84] sm:$0xff]
    %s86 = scalar_lea.vmem [#allocation2], 48
    %v87 = vld [vmem:[%s86] sm:$0xff]
    %88 = xla_tuple %v85, %v87
    %89 = xla_tuple %88
    %v90 = vsub.f32 %v85, %v87
    %91 = xla_tuple %v90
    %s92 = scalar_lea.vmem %s2, 48
    %93 = vst [vmem:[%s92] sm:$0xff] %v90
    %s94 = scalar_lea.vmem [#allocation0], 112
    %v95 = vld [vmem:[%s94] sm:$0xff]
    %s96 = scalar_lea.vmem [#allocation2], 112
    %v97 = vld [vmem:[%s96] sm:$0xff]
    %98 = xla_tuple %v95, %v97
    %99 = xla_tuple %98
    %v100 = vsub.f32 %v95, %v97
    %101 = xla_tuple %v100
    %s102 = scalar_lea.vmem %s2, 112
    %103 = vst [vmem:[%s102] sm:$0xff] %v100
    %s104 = scalar_lea.vmem [#allocation0], 8
    %v105 = vld [vmem:[%s104] sm:$0xff]
    %s106 = scalar_lea.vmem [#allocation2], 8
    %v107 = vld [vmem:[%s106] sm:$0xff]
    %108 = xla_tuple %v105, %v107
    %109 = xla_tuple %108
    %v110 = vsub.f32 %v105, %v107
    %111 = xla_tuple %v110
    %s112 = scalar_lea.vmem %s2, 8
    %113 = vst [vmem:[%s112] sm:$0xff] %v110
    %s114 = scalar_lea.vmem [#allocation0], 72
    %v115 = vld [vmem:[%s114] sm:$0xff]
    %s116 = scalar_lea.vmem [#allocation2], 72
    %v117 = vld [vmem:[%s116] sm:$0xff]
    %118 = xla_tuple %v115, %v117
    %119 = xla_tuple %118
    %v120 = vsub.f32 %v115, %v117
    %121 = xla_tuple %v120
    %s122 = scalar_lea.vmem %s2, 72
    %123 = vst [vmem:[%s122] sm:$0xff] %v120
    %s124 = scalar_lea.vmem [#allocation0], 24
    %v125 = vld [vmem:[%s124] sm:$0xff]
    %s126 = scalar_lea.vmem [#allocation2], 24
    %v127 = vld [vmem:[%s126] sm:$0xff]
    %128 = xla_tuple %v125, %v127
    %129 = xla_tuple %128
    %v130 = vsub.f32 %v125, %v127
    %131 = xla_tuple %v130
    %s132 = scalar_lea.vmem %s2, 24
    %133 = vst [vmem:[%s132] sm:$0xff] %v130
    %s134 = scalar_lea.vmem [#allocation0], 88
    %v135 = vld [vmem:[%s134] sm:$0xff]
    %s136 = scalar_lea.vmem [#allocation2], 88
    %v137 = vld [vmem:[%s136] sm:$0xff]
    %138 = xla_tuple %v135, %v137
    %139 = xla_tuple %138
    %v140 = vsub.f32 %v135, %v137
    %141 = xla_tuple %v140
    %s142 = scalar_lea.vmem %s2, 88
    %143 = vst [vmem:[%s142] sm:$0xff] %v140
    %s144 = scalar_lea.vmem [#allocation0], 40
    %v145 = vld [vmem:[%s144] sm:$0xff]
    %s146 = scalar_lea.vmem [#allocation2], 40
    %v147 = vld [vmem:[%s146] sm:$0xff]
    %148 = xla_tuple %v145, %v147
    %149 = xla_tuple %148
    %v150 = vsub.f32 %v145, %v147
    %151 = xla_tuple %v150
    %s152 = scalar_lea.vmem %s2, 40
    %153 = vst [vmem:[%s152] sm:$0xff] %v150
    %s154 = scalar_lea.vmem [#allocation0], 104
    %v155 = vld [vmem:[%s154] sm:$0xff]
    %s156 = scalar_lea.vmem [#allocation2], 104
    %v157 = vld [vmem:[%s156] sm:$0xff]
    %158 = xla_tuple %v155, %v157
    %159 = xla_tuple %158
    %v160 = vsub.f32 %v155, %v157
    %161 = xla_tuple %v160
    %s162 = scalar_lea.vmem %s2, 104
    %163 = vst [vmem:[%s162] sm:$0xff] %v160
    %s164 = scalar_lea.vmem [#allocation0], 56
    %v165 = vld [vmem:[%s164] sm:$0xff]
    %s166 = scalar_lea.vmem [#allocation2], 56
    %v167 = vld [vmem:[%s166] sm:$0xff]
    %168 = xla_tuple %v165, %v167
    %169 = xla_tuple %168
    %v170 = vsub.f32 %v165, %v167
    %171 = xla_tuple %v170
    %s172 = scalar_lea.vmem %s2, 56
    %173 = vst [vmem:[%s172] sm:$0xff] %v170
    %s174 = scalar_lea.vmem [#allocation0], 120
    %v175 = vld [vmem:[%s174] sm:$0xff]
    %s176 = scalar_lea.vmem [#allocation2], 120
    %v177 = vld [vmem:[%s176] sm:$0xff]
    %178 = xla_tuple %v175, %v177
    %179 = xla_tuple %178
    %v180 = vsub.f32 %v175, %v177
    %181 = xla_tuple %v180
    %s182 = scalar_lea.vmem %s2, 120
    %183 = vst [vmem:[%s182] sm:$0xff] %v180
    %184 = vsyncpa [#allocation1], 1
    %185 = vsyncpa [#allocation3], 1

// kernel: sobel_edge_loss.1
$region0: #{sobel_edge_loss.1}
  #allocation0 [shape = 'u32[]', space=smem, size = 0x4, offset = 0x4, fixed_abs, tag = 'smem constant byte address 0x4 - core index']
  #allocation1 [shape = 'u32[144,128]{1,0:T(1,128)}', space=vmem, size = 0x12000, scoped, tag = 'internal scratch']
  #allocation2 [shape = 'f32[16,512]{1,0:T(8,128)}', space=vmem, size = 0x8000, scoped, tag = 'scratch operand']
  %s0 = inlined_call_operand.vmem [shape: f32[4,16,16], index: 0, kind: input, shape index: {}]
  %s1 = inlined_call_operand.vmem [shape: f32[512,128], index: 1, kind: input, shape index: {}]
  %s2 = inlined_call_operand.vmem [shape: f32[1,16,128], index: 2, kind: input, shape index: {}]
  %s3 = inlined_call_operand.vmem [shape: f32[1,8,128], index: 3, kind: output, shape index: {}]
  %s4 = sld [smem:[#allocation0]]
  $region22: #{sobel_edge_loss.1} parent=0
    _
  %s6 = ssub.s32 1, %s4
  %s7 = scalar_select 0, %s6, %s4
  // Predicated region
  $region2: #{sobel_edge_loss.1} parent=0 // pred_check
    _
  $region3: #{sobel_edge_loss.1} parent=0 // pred_check_branch
    %9 = sbr.rel (0) target = $region5
  $region4: #{sobel_edge_loss.1} parent=0 // pred_region
    _
  $region5: #{sobel_edge_loss.1} parent=0 // pred_fallthru
    _
  // Predicated region
  $region6: #{sobel_edge_loss.1} parent=0 // pred_check
    _
  $region7: #{sobel_edge_loss.1} parent=0 // pred_check_branch
    %11 = sbr.rel (0) target = $region9
  $region8: #{sobel_edge_loss.1} parent=0 // pred_region
    _
  $region9: #{sobel_edge_loss.1} parent=0 // pred_fallthru
    _
  // Predicated region
  $region10: #{sobel_edge_loss.1} parent=0 // pred_check
    _
  $region11: #{sobel_edge_loss.1} parent=0 // pred_check_branch
    %13 = sbr.rel (0) target = $region13
  $region12: #{sobel_edge_loss.1} parent=0 // pred_region
    _
  $region13: #{sobel_edge_loss.1} parent=0 // pred_fallthru
    _
  %v14 = vld [vmem:[%s2] sm:$0xff]
  %v15 = vld [vmem:[%s2 + $0x8] sm:$0xff]
  %v16 = vld [vmem:[%s0] sm:$0xff]
  %v17 = vld [vmem:[%s0 + $0x8] sm:$0xff]
  %vm18 = vcmask 130048
  %v20 = vsel %vm18, %v16, 0
  %v23 = vsel %vm18, %v17, 0
  %25 = vmatprep.subr.mxu0 0.0
  %26 = vmatpush1.msra.mxu0 0.0
  %27 = vmatprep.subr.mxu0 0.0
  %28 = vmatpush1.msra.mxu0 0.0
  %29 = vmatprep.subr.mxu0 0.0
  %30 = vmatpush1.msra.mxu0 0.0
  %31 = vmatprep.subr.mxu0 0.0
  %32 = vmatpush1.msra.mxu0 0.0
  %33 = vmatprep.subr.mxu0 0.0
  %34 = vmatpush1.msra.mxu0 0.0
  %35 = vmatprep.subr.mxu0 0.0
  %36 = vmatpush1.msra.mxu0 0.0
  %37 = vmatprep.subr.mxu0 0.0
  %38 = vmatpush1.msra.mxu0 0.0
  %39 = vmatprep.subr.mxu0 0.0
  %40 = vmatpush1.msra.mxu0 0.0
  %41 = vmatprep.subr.mxu0 0.0
  %42 = vmatpush1.msra.mxu0 0.0
  %43 = vmatprep.subr.mxu0 0.0
  %44 = vmatpush1.msra.mxu0 0.0
  %45 = vmatprep.subr.mxu0 0.0
  %46 = vmatpush1.msra.mxu0 0.0
  %47 = vmatprep.subr.mxu0 0.0
  %48 = vmatpush1.msra.mxu0 0.0
  %49 = vmatprep.subr.mxu0 0.0
  %50 = vmatpush1.msra.mxu0 0.0
  %51 = vmatprep.subr.mxu0 0.0
  %52 = vmatpush1.msra.mxu0 0.0
  %53 = vmatprep.subr.mxu0 0.0
  %54 = vmatpush1.msra.mxu0 %v15
  %55 = vmatprep.subr.mxu0 0.0
  %56 = vmatpush1.msra.mxu0 %v14
  %57 = vmatprep.subr.mxu0 0.0
  %58 = vmatpush2.msra.mxu0 0.0
  %59 = vmatprep.subr.mxu0 0.0
  %60 = vmatpush2.msra.mxu0 0.0
  %61 = vmatprep.subr.mxu0 0.0
  %62 = vmatpush2.msra.mxu0 0.0
  %63 = vmatprep.subr.mxu0 0.0
  %64 = vmatpush2.msra.mxu0 0.0
  %65 = vmatprep.subr.mxu0 0.0
  %66 = vmatpush2.msra.mxu0 0.0
  %67 = vmatprep.subr.mxu0 0.0
  %68 = vmatpush2.msra.mxu0 0.0
  %69 = vmatprep.subr.mxu0 0.0
  %70 = vmatpush2.msra.mxu0 0.0
  %71 = vmatprep.subr.mxu0 0.0
  %72 = vmatpush2.msra.mxu0 0.0
  %73 = vmatprep.subr.mxu0 0.0
  %74 = vmatpush2.msra.mxu0 0.0
  %75 = vmatprep.subr.mxu0 0.0
  %76 = vmatpush2.msra.mxu0 0.0
  %77 = vmatprep.subr.mxu0 0.0
  %78 = vmatpush2.msra.mxu0 0.0
  %79 = vmatprep.subr.mxu0 0.0
  %80 = vmatpush2.msra.mxu0 0.0
  %81 = vmatprep.subr.mxu0 0.0
  %82 = vmatpush2.msra.mxu0 0.0
  %83 = vmatprep.subr.mxu0 0.0
  %84 = vmatpush2.msra.mxu0 0.0
  %85 = vmatprep.subr.mxu0 0.0
  %86 = vmatpush2.msra.mxu0 0.0
  %87 = vmatprep.subr.mxu0 0.0
  %88 = vmatpush2.msra.mxu0 0.0
  %89 = vmatprep.mubr.f32.mxu0 0.0
  %90 = vmatmul.mubr.f32.gmra.mxu0 %v20
  %v91 = vpop.f32.mrf.mxu0
  %v92 = vadd.f32 0.0, %v91
  %v93 = vpop.f32.mrf.mxu0
  %94 = vmatprep.mubr.f32.mxu0 0.0
  %95 = vmatmul.mubr.f32.gmra.mxu0 %v23
  %v96 = vpop.f32.mrf.mxu0
  %v97 = vadd.f32 0.0, %v96
  %v98 = vpop.f32.mrf.mxu0
  %99 = vdwg.mxu0
  %100 = vst [vmem:[#allocation2] sm:$0xff] %v92
  %101 = vst [vmem:[#allocation2 + $0x20] sm:$0xff] %v97
  %s102 = scalar_lea.vmem %s0, 16
  %v103 = vld [vmem:[%s102] sm:$0xff]
  %v104 = vld [vmem:[%s102 + $0x8] sm:$0xff]
  %v106 = vsel %vm18, %v103, 0
  %v109 = vsel %vm18, %v104, 0
  %111 = vmatprep.subr.mxu0 0.0
  %112 = vmatpush1.msra.mxu0 0.0
  %113 = vmatprep.subr.mxu0 0.0
  %114 = vmatpush1.msra.mxu0 0.0
  %115 = vmatprep.subr.mxu0 0.0
  %116 = vmatpush1.msra.mxu0 0.0
  %117 = vmatprep.subr.mxu0 0.0
  %118 = vmatpush1.msra.mxu0 0.0
  %119 = vmatprep.subr.mxu0 0.0
  %120 = vmatpush1.msra.mxu0 0.0
  %121 = vmatprep.subr.mxu0 0.0
  %122 = vmatpush1.msra.mxu0 0.0
  %123 = vmatprep.subr.mxu0 0.0
  %124 = vmatpush1.msra.mxu0 0.0
  %125 = vmatprep.subr.mxu0 0.0
  %126 = vmatpush1.msra.mxu0 0.0
  %127 = vmatprep.subr.mxu0 0.0
  %128 = vmatpush1.msra.mxu0 0.0
  %129 = vmatprep.subr.mxu0 0.0
  %130 = vmatpush1.msra.mxu0 0.0
  %131 = vmatprep.subr.mxu0 0.0
  %132 = vmatpush1.msra.mxu0 0.0
  %133 = vmatprep.subr.mxu0 0.0
  %134 = vmatpush1.msra.mxu0 0.0
  %135 = vmatprep.subr.mxu0 0.0
  %136 = vmatpush1.msra.mxu0 0.0
  %137 = vmatprep.subr.mxu0 0.0
  %138 = vmatpush1.msra.mxu0 0.0
  %139 = vmatprep.subr.mxu0 0.0
  %140 = vmatpush1.msra.mxu0 %v15
  %141 = vmatprep.subr.mxu0 0.0
  %142 = vmatpush1.msra.mxu0 %v14
  %143 = vmatprep.subr.mxu0 0.0
  %144 = vmatpush2.msra.mxu0 0.0
  %145 = vmatprep.subr.mxu0 0.0
  %146 = vmatpush2.msra.mxu0 0.0
  %147 = vmatprep.subr.mxu0 0.0
  %148 = vmatpush2.msra.mxu0 0.0
  %149 = vmatprep.subr.mxu0 0.0
  %150 = vmatpush2.msra.mxu0 0.0
  %151 = vmatprep.subr.mxu0 0.0
  %152 = vmatpush2.msra.mxu0 0.0
  %153 = vmatprep.subr.mxu0 0.0
  %154 = vmatpush2.msra.mxu0 0.0
  %155 = vmatprep.subr.mxu0 0.0
  %156 = vmatpush2.msra.mxu0 0.0
  %157 = vmatprep.subr.mxu0 0.0
  %158 = vmatpush2.msra.mxu0 0.0
  %159 = vmatprep.subr.mxu0 0.0
  %160 = vmatpush2.msra.mxu0 0.0
  %161 = vmatprep.subr.mxu0 0.0
  %162 = vmatpush2.msra.mxu0 0.0
  %163 = vmatprep.subr.mxu0 0.0
  %164 = vmatpush2.msra.mxu0 0.0
  %165 = vmatprep.subr.mxu0 0.0
  %166 = vmatpush2.msra.mxu0 0.0
  %167 = vmatprep.subr.mxu0 0.0
  %168 = vmatpush2.msra.mxu0 0.0
  %169 = vmatprep.subr.mxu0 0.0
  %170 = vmatpush2.msra.mxu0 0.0
  %171 = vmatprep.subr.mxu0 0.0
  %172 = vmatpush2.msra.mxu0 0.0
  %173 = vmatprep.subr.mxu0 0.0
  %174 = vmatpush2.msra.mxu0 0.0
  %175 = vmatprep.mubr.f32.mxu0 0.0
  %176 = vmatmul.mubr.f32.gmra.mxu0 %v106
  %v177 = vpop.f32.mrf.mxu0
  %v178 = vadd.f32 0.0, %v177
  %v179 = vpop.f32.mrf.mxu0
  %180 = vmatprep.mubr.f32.mxu0 0.0
  %181 = vmatmul.mubr.f32.gmra.mxu0 %v109
  %v182 = vpop.f32.mrf.mxu0
  %v183 = vadd.f32 0.0, %v182
  %v184 = vpop.f32.mrf.mxu0
  %185 = vdwg.mxu0
  %186 = vst [vmem:[#allocation2 + $0x8] sm:$0xff] %v178
  %187 = vst [vmem:[#allocation2 + $0x28] sm:$0xff] %v183
  %s188 = scalar_lea.vmem %s0, 32
  %v189 = vld [vmem:[%s188] sm:$0xff]
  %v190 = vld [vmem:[%s188 + $0x8] sm:$0xff]
  %v192 = vsel %vm18, %v189, 0
  %v195 = vsel %vm18, %v190, 0
  %197 = vmatprep.subr.mxu0 0.0
  %198 = vmatpush1.msra.mxu0 0.0
  %199 = vmatprep.subr.mxu0 0.0
  %200 = vmatpush1.msra.mxu0 0.0
  %201 = vmatprep.subr.mxu0 0.0
  %202 = vmatpush1.msra.mxu0 0.0
  %203 = vmatprep.subr.mxu0 0.0
  %204 = vmatpush1.msra.mxu0 0.0
  %205 = vmatprep.subr.mxu0 0.0
  %206 = vmatpush1.msra.mxu0 0.0
  %207 = vmatprep.subr.mxu0 0.0
  %208 = vmatpush1.msra.mxu0 0.0
  %209 = vmatprep.subr.mxu0 0.0
  %210 = vmatpush1.msra.mxu0 0.0
  %211 = vmatprep.subr.mxu0 0.0
  %212 = vmatpush1.msra.mxu0 0.0
  %213 = vmatprep.subr.mxu0 0.0
  %214 = vmatpush1.msra.mxu0 0.0
  %215 = vmatprep.subr.mxu0 0.0
  %216 = vmatpush1.msra.mxu0 0.0
  %217 = vmatprep.subr.mxu0 0.0
  %218 = vmatpush1.msra.mxu0 0.0
  %219 = vmatprep.subr.mxu0 0.0
  %220 = vmatpush1.msra.mxu0 0.0
  %221 = vmatprep.subr.mxu0 0.0
  %222 = vmatpush1.msra.mxu0 0.0
  %223 = vmatprep.subr.mxu0 0.0
  %224 = vmatpush1.msra.mxu0 0.0
  %225 = vmatprep.subr.mxu0 0.0
  %226 = vmatpush1.msra.mxu0 %v15
  %227 = vmatprep.subr.mxu0 0.0
  %228 = vmatpush1.msra.mxu0 %v14
  %229 = vmatprep.subr.mxu0 0.0
  %230 = vmatpush2.msra.mxu0 0.0
  %231 = vmatprep.subr.mxu0 0.0
  %232 = vmatpush2.msra.mxu0 0.0
  %233 = vmatprep.subr.mxu0 0.0
  %234 = vmatpush2.msra.mxu0 0.0
  %235 = vmatprep.subr.mxu0 0.0
  %236 = vmatpush2.msra.mxu0 0.0
  %237 = vmatprep.subr.mxu0 0.0
  %238 = vmatpush2.msra.mxu0 0.0
  %239 = vmatprep.subr.mxu0 0.0
  %240 = vmatpush2.msra.mxu0 0.0
  %241 = vmatprep.subr.mxu0 0.0
  %242 = vmatpush2.msra.mxu0 0.0
  %243 = vmatprep.subr.mxu0 0.0
  %244 = vmatpush2.msra.mxu0 0.0
  %245 = vmatprep.subr.mxu0 0.0
  %246 = vmatpush2.msra.mxu0 0.0
  %247 = vmatprep.subr.mxu0 0.0
  %248 = vmatpush2.msra.mxu0 0.0
  %249 = vmatprep.subr.mxu0 0.0
  %250 = vmatpush2.msra.mxu0 0.0
  %251 = vmatprep.subr.mxu0 0.0
  %252 = vmatpush2.msra.mxu0 0.0
  %253 = vmatprep.subr.mxu0 0.0
  %254 = vmatpush2.msra.mxu0 0.0
  %255 = vmatprep.subr.mxu0 0.0
  %256 = vmatpush2.msra.mxu0 0.0
  %257 = vmatprep.subr.mxu0 0.0
  %258 = vmatpush2.msra.mxu0 0.0
  %259 = vmatprep.subr.mxu0 0.0
  %260 = vmatpush2.msra.mxu0 0.0
  %261 = vmatprep.mubr.f32.mxu0 0.0
  %262 = vmatmul.mubr.f32.gmra.mxu0 %v192
  %v263 = vpop.f32.mrf.mxu0
  %v264 = vadd.f32 0.0, %v263
  %v265 = vpop.f32.mrf.mxu0
  %266 = vmatprep.mubr.f32.mxu0 0.0
  %267 = vmatmul.mubr.f32.gmra.mxu0 %v195
  %v268 = vpop.f32.mrf.mxu0
  %v269 = vadd.f32 0.0, %v268
  %v270 = vpop.f32.mrf.mxu0
  %271 = vdwg.mxu0
  %272 = vst [vmem:[#allocation2 + $0x10] sm:$0xff] %v264
  %273 = vst [vmem:[#allocation2 + $0x30] sm:$0xff] %v269
  %s274 = scalar_lea.vmem %s0, 48
  %v275 = vld [vmem:[%s274] sm:$0xff]
  %v276 = vld [vmem:[%s274 + $0x8] sm:$0xff]
  %v278 = vsel %vm18, %v275, 0
  %v281 = vsel %vm18, %v276, 0
  %283 = vmatprep.subr.mxu0 0.0
  %284 = vmatpush1.msra.mxu0 0.0
  %285 = vmatprep.subr.mxu0 0.0
  %286 = vmatpush1.msra.mxu0 0.0
  %287 = vmatprep.subr.mxu0 0.0
  %288 = vmatpush1.msra.mxu0 0.0
  %289 = vmatprep.subr.mxu0 0.0
  %290 = vmatpush1.msra.mxu0 0.0
  %291 = vmatprep.subr.mxu0 0.0
  %292 = vmatpush1.msra.mxu0 0.0
  %293 = vmatprep.subr.mxu0 0.0
  %294 = vmatpush1.msra.mxu0 0.0
  %295 = vmatprep.subr.mxu0 0.0
  %296 = vmatpush1.msra.mxu0 0.0
  %297 = vmatprep.subr.mxu0 0.0
  %298 = vmatpush1.msra.mxu0 0.0
  %299 = vmatprep.subr.mxu0 0.0
  %300 = vmatpush1.msra.mxu0 0.0
  %301 = vmatprep.subr.mxu0 0.0
  %302 = vmatpush1.msra.mxu0 0.0
  %303 = vmatprep.subr.mxu0 0.0
  %304 = vmatpush1.msra.mxu0 0.0
  %305 = vmatprep.subr.mxu0 0.0
  %306 = vmatpush1.msra.mxu0 0.0
  %307 = vmatprep.subr.mxu0 0.0
  %308 = vmatpush1.msra.mxu0 0.0
  %309 = vmatprep.subr.mxu0 0.0
  %310 = vmatpush1.msra.mxu0 0.0
  %311 = vmatprep.subr.mxu0 0.0
  %312 = vmatpush1.msra.mxu0 %v15
  %313 = vmatprep.subr.mxu0 0.0
  %314 = vmatpush1.msra.mxu0 %v14
  %315 = vmatprep.subr.mxu0 0.0
  %316 = vmatpush2.msra.mxu0 0.0
  %317 = vmatprep.subr.mxu0 0.0
  %318 = vmatpush2.msra.mxu0 0.0
  %319 = vmatprep.subr.mxu0 0.0
  %320 = vmatpush2.msra.mxu0 0.0
  %321 = vmatprep.subr.mxu0 0.0
  %322 = vmatpush2.msra.mxu0 0.0
  %323 = vmatprep.subr.mxu0 0.0
  %324 = vmatpush2.msra.mxu0 0.0
  %325 = vmatprep.subr.mxu0 0.0
  %326 = vmatpush2.msra.mxu0 0.0
  %327 = vmatprep.subr.mxu0 0.0
  %328 = vmatpush2.msra.mxu0 0.0
  %329 = vmatprep.subr.mxu0 0.0
  %330 = vmatpush2.msra.mxu0 0.0
  %331 = vmatprep.subr.mxu0 0.0
  %332 = vmatpush2.msra.mxu0 0.0
  %333 = vmatprep.subr.mxu0 0.0
  %334 = vmatpush2.msra.mxu0 0.0
  %335 = vmatprep.subr.mxu0 0.0
  %336 = vmatpush2.msra.mxu0 0.0
  %337 = vmatprep.subr.mxu0 0.0
  %338 = vmatpush2.msra.mxu0 0.0
  %339 = vmatprep.subr.mxu0 0.0
  %340 = vmatpush2.msra.mxu0 0.0
  %341 = vmatprep.subr.mxu0 0.0
  %342 = vmatpush2.msra.mxu0 0.0
  %343 = vmatprep.subr.mxu0 0.0
  %344 = vmatpush2.msra.mxu0 0.0
  %345 = vmatprep.subr.mxu0 0.0
  %346 = vmatpush2.msra.mxu0 0.0
  %347 = vmatprep.mubr.f32.mxu0 0.0
  %348 = vmatmul.mubr.f32.gmra.mxu0 %v278
  %v349 = vpop.f32.mrf.mxu0
  %v350 = vadd.f32 0.0, %v349
  %v351 = vpop.f32.mrf.mxu0
  %352 = vmatprep.mubr.f32.mxu0 0.0
  %353 = vmatmul.mubr.f32.gmra.mxu0 %v281
  %v354 = vpop.f32.mrf.mxu0
  %v355 = vadd.f32 0.0, %v354
  %v356 = vpop.f32.mrf.mxu0
  %357 = vdwg.mxu0
  %358 = vst [vmem:[#allocation2 + $0x18] sm:$0xff] %v350
  %359 = vst [vmem:[#allocation2 + $0x38] sm:$0xff] %v355
  %v360 = vld [vmem:[#allocation2] sm:$0xff]
  %v361 = vld [vmem:[#allocation2 + $0x8] sm:$0xff]
  %v362 = vld [vmem:[#allocation2 + $0x10] sm:$0xff]
  %v363 = vld [vmem:[#allocation2 + $0x18] sm:$0xff]
  %v364 = vld [vmem:[#allocation2 + $0x20] sm:$0xff]
  %v365 = vld [vmem:[#allocation2 + $0x28] sm:$0xff]
  %v366 = vld [vmem:[#allocation2 + $0x30] sm:$0xff]
  %v367 = vld [vmem:[#allocation2 + $0x38] sm:$0xff]
  %v368 = vld [vmem:[%s1] sm:$0xff]
  %v369 = vld [vmem:[%s1 + $0x8] sm:$0xff]
  %v370 = vld [vmem:[%s1 + $0x10] sm:$0xff]
  %v371 = vld [vmem:[%s1 + $0x18] sm:$0xff]
  %v372 = vld [vmem:[%s1 + $0x20] sm:$0xff]
  %v373 = vld [vmem:[%s1 + $0x28] sm:$0xff]
  %v374 = vld [vmem:[%s1 + $0x30] sm:$0xff]
  %v375 = vld [vmem:[%s1 + $0x38] sm:$0xff]
  %v376 = vld [vmem:[%s1 + $0x40] sm:$0xff]
  %v377 = vld [vmem:[%s1 + $0x48] sm:$0xff]
  %v378 = vld [vmem:[%s1 + $0x50] sm:$0xff]
  %v379 = vld [vmem:[%s1 + $0x58] sm:$0xff]
  %v380 = vld [vmem:[%s1 + $0x60] sm:$0xff]
  %v381 = vld [vmem:[%s1 + $0x68] sm:$0xff]
  %v382 = vld [vmem:[%s1 + $0x70] sm:$0xff]
  %v383 = vld [vmem:[%s1 + $0x78] sm:$0xff]
  %v384 = vld [vmem:[%s1 + $0x80] sm:$0xff]
  %v385 = vld [vmem:[%s1 + $0x88] sm:$0xff]
  %v386 = vld [vmem:[%s1 + $0x90] sm:$0xff]
  %v387 = vld [vmem:[%s1 + $0x98] sm:$0xff]
  %v388 = vld [vmem:[%s1 + $0xa0] sm:$0xff]
  %v389 = vld [vmem:[%s1 + $0xa8] sm:$0xff]
  %v390 = vld [vmem:[%s1 + $0xb0] sm:$0xff]
  %v391 = vld [vmem:[%s1 + $0xb8] sm:$0xff]
  %v392 = vld [vmem:[%s1 + $0xc0] sm:$0xff]
  %v393 = vld [vmem:[%s1 + $0xc8] sm:$0xff]
  %v394 = vld [vmem:[%s1 + $0xd0] sm:$0xff]
  %v395 = vld [vmem:[%s1 + $0xd8] sm:$0xff]
  %v396 = vld [vmem:[%s1 + $0xe0] sm:$0xff]
  %v397 = vld [vmem:[%s1 + $0xe8] sm:$0xff]
  %v398 = vld [vmem:[%s1 + $0xf0] sm:$0xff]
  %v399 = vld [vmem:[%s1 + $0xf8] sm:$0xff]
  %v400 = vld [vmem:[%s1 + $0x100] sm:$0xff]
  %v401 = vld [vmem:[%s1 + $0x108] sm:$0xff]
  %v402 = vld [vmem:[%s1 + $0x110] sm:$0xff]
  %v403 = vld [vmem:[%s1 + $0x118] sm:$0xff]
  %v404 = vld [vmem:[%s1 + $0x120] sm:$0xff]
  %v405 = vld [vmem:[%s1 + $0x128] sm:$0xff]
  %v406 = vld [vmem:[%s1 + $0x130] sm:$0xff]
  %v407 = vld [vmem:[%s1 + $0x138] sm:$0xff]
  %v408 = vld [vmem:[%s1 + $0x140] sm:$0xff]
  %v409 = vld [vmem:[%s1 + $0x148] sm:$0xff]
  %v410 = vld [vmem:[%s1 + $0x150] sm:$0xff]
  %v411 = vld [vmem:[%s1 + $0x158] sm:$0xff]
  %v412 = vld [vmem:[%s1 + $0x160] sm:$0xff]
  %v413 = vld [vmem:[%s1 + $0x168] sm:$0xff]
  %v414 = vld [vmem:[%s1 + $0x170] sm:$0xff]
  %v415 = vld [vmem:[%s1 + $0x178] sm:$0xff]
  %v416 = vld [vmem:[%s1 + $0x180] sm:$0xff]
  %v417 = vld [vmem:[%s1 + $0x188] sm:$0xff]
  %v418 = vld [vmem:[%s1 + $0x190] sm:$0xff]
  %v419 = vld [vmem:[%s1 + $0x198] sm:$0xff]
  %v420 = vld [vmem:[%s1 + $0x1a0] sm:$0xff]
  %v421 = vld [vmem:[%s1 + $0x1a8] sm:$0xff]
  %v422 = vld [vmem:[%s1 + $0x1b0] sm:$0xff]
  %v423 = vld [vmem:[%s1 + $0x1b8] sm:$0xff]
  %v424 = vld [vmem:[%s1 + $0x1c0] sm:$0xff]
  %v425 = vld [vmem:[%s1 + $0x1c8] sm:$0xff]
  %v426 = vld [vmem:[%s1 + $0x1d0] sm:$0xff]
  %v427 = vld [vmem:[%s1 + $0x1d8] sm:$0xff]
  %v428 = vld [vmem:[%s1 + $0x1e0] sm:$0xff]
  %v429 = vld [vmem:[%s1 + $0x1e8] sm:$0xff]
  %v430 = vld [vmem:[%s1 + $0x1f0] sm:$0xff]
  %v431 = vld [vmem:[%s1 + $0x1f8] sm:$0xff]
  %432 = vmatprep.subr.mxu0 0.0
  %433 = vmatpush1.msra.mxu0 %v383
  %434 = vmatprep.subr.mxu0 0.0
  %435 = vmatpush1.msra.mxu0 %v382
  %436 = vmatprep.subr.mxu0 0.0
  %437 = vmatpush1.msra.mxu0 %v381
  %438 = vmatprep.subr.mxu0 0.0
  %439 = vmatpush1.msra.mxu0 %v380
  %440 = vmatprep.subr.mxu0 0.0
  %441 = vmatpush1.msra.mxu0 %v379
  %442 = vmatprep.subr.mxu0 0.0
  %443 = vmatpush1.msra.mxu0 %v378
  %444 = vmatprep.subr.mxu0 0.0
  %445 = vmatpush1.msra.mxu0 %v377
  %446 = vmatprep.subr.mxu0 0.0
  %447 = vmatpush1.msra.mxu0 %v376
  %448 = vmatprep.subr.mxu0 0.0
  %449 = vmatpush1.msra.mxu0 %v375
  %450 = vmatprep.subr.mxu0 0.0
  %451 = vmatpush1.msra.mxu0 %v374
  %452 = vmatprep.subr.mxu0 0.0
  %453 = vmatpush1.msra.mxu0 %v373
  %454 = vmatprep.subr.mxu0 0.0
  %455 = vmatpush1.msra.mxu0 %v372
  %456 = vmatprep.subr.mxu0 0.0
  %457 = vmatpush1.msra.mxu0 %v371
  %458 = vmatprep.subr.mxu0 0.0
  %459 = vmatpush1.msra.mxu0 %v370
  %460 = vmatprep.subr.mxu0 0.0
  %461 = vmatpush1.msra.mxu0 %v369
  %462 = vmatprep.subr.mxu0 0.0
  %463 = vmatpush1.msra.mxu0 %v368
  %464 = vmatprep.subr.mxu0 0.0
  %465 = vmatpush2.msra.mxu0 %v399
  %466 = vmatprep.subr.mxu0 0.0
  %467 = vmatpush2.msra.mxu0 %v398
  %468 = vmatprep.subr.mxu0 0.0
  %469 = vmatpush2.msra.mxu0 %v397
  %470 = vmatprep.subr.mxu0 0.0
  %471 = vmatpush2.msra.mxu0 %v396
  %472 = vmatprep.subr.mxu0 0.0
  %473 = vmatpush2.msra.mxu0 %v395
  %474 = vmatprep.subr.mxu0 0.0
  %475 = vmatpush2.msra.mxu0 %v394
  %476 = vmatprep.subr.mxu0 0.0
  %477 = vmatpush2.msra.mxu0 %v393
  %478 = vmatprep.subr.mxu0 0.0
  %479 = vmatpush2.msra.mxu0 %v392
  %480 = vmatprep.subr.mxu0 0.0
  %481 = vmatpush2.msra.mxu0 %v391
  %482 = vmatprep.subr.mxu0 0.0
  %483 = vmatpush2.msra.mxu0 %v390
  %484 = vmatprep.subr.mxu0 0.0
  %485 = vmatpush2.msra.mxu0 %v389
  %486 = vmatprep.subr.mxu0 0.0
  %487 = vmatpush2.msra.mxu0 %v388
  %488 = vmatprep.subr.mxu0 0.0
  %489 = vmatpush2.msra.mxu0 %v387
  %490 = vmatprep.subr.mxu0 0.0
  %491 = vmatpush2.msra.mxu0 %v386
  %492 = vmatprep.subr.mxu0 0.0
  %493 = vmatpush2.msra.mxu0 %v385
  %494 = vmatprep.subr.mxu0 0.0
  %495 = vmatpush2.msra.mxu0 %v384
  %496 = vmatprep.mubr.f32.mxu0 %v361
  %497 = vmatmul.mubr.f32.gmra.mxu0 %v360
  %v498 = vpop.f32.mrf.mxu0
  %v499 = vadd.f32 0.0, %v498
  %v500 = vpop.f32.mrf.mxu0
  %501 = vmatprep.mubr.f32.mxu0 %v365
  %502 = vmatmul.mubr.f32.gmra.mxu0 %v364
  %v503 = vpop.f32.mrf.mxu0
  %v504 = vadd.f32 0.0, %v503
  %v505 = vpop.f32.mrf.mxu0
  %506 = vdwg.mxu0
  %507 = vmatprep.subr.mxu0 0.0
  %508 = vmatpush1.msra.mxu0 %v415
  %509 = vmatprep.subr.mxu0 0.0
  %510 = vmatpush1.msra.mxu0 %v414
  %511 = vmatprep.subr.mxu0 0.0
  %512 = vmatpush1.msra.mxu0 %v413
  %513 = vmatprep.subr.mxu0 0.0
  %514 = vmatpush1.msra.mxu0 %v412
  %515 = vmatprep.subr.mxu0 0.0
  %516 = vmatpush1.msra.mxu0 %v411
  %517 = vmatprep.subr.mxu0 0.0
  %518 = vmatpush1.msra.mxu0 %v410
  %519 = vmatprep.subr.mxu0 0.0
  %520 = vmatpush1.msra.mxu0 %v409
  %521 = vmatprep.subr.mxu0 0.0
  %522 = vmatpush1.msra.mxu0 %v408
  %523 = vmatprep.subr.mxu0 0.0
  %524 = vmatpush1.msra.mxu0 %v407
  %525 = vmatprep.subr.mxu0 0.0
  %526 = vmatpush1.msra.mxu0 %v406
  %527 = vmatprep.subr.mxu0 0.0
  %528 = vmatpush1.msra.mxu0 %v405
  %529 = vmatprep.subr.mxu0 0.0
  %530 = vmatpush1.msra.mxu0 %v404
  %531 = vmatprep.subr.mxu0 0.0
  %532 = vmatpush1.msra.mxu0 %v403
  %533 = vmatprep.subr.mxu0 0.0
  %534 = vmatpush1.msra.mxu0 %v402
  %535 = vmatprep.subr.mxu0 0.0
  %536 = vmatpush1.msra.mxu0 %v401
  %537 = vmatprep.subr.mxu0 0.0
  %538 = vmatpush1.msra.mxu0 %v400
  %539 = vmatprep.subr.mxu0 0.0
  %540 = vmatpush2.msra.mxu0 %v431
  %541 = vmatprep.subr.mxu0 0.0
  %542 = vmatpush2.msra.mxu0 %v430
  %543 = vmatprep.subr.mxu0 0.0
  %544 = vmatpush2.msra.mxu0 %v429
  %545 = vmatprep.subr.mxu0 0.0
  %546 = vmatpush2.msra.mxu0 %v428
  %547 = vmatprep.subr.mxu0 0.0
  %548 = vmatpush2.msra.mxu0 %v427
  %549 = vmatprep.subr.mxu0 0.0
  %550 = vmatpush2.msra.mxu0 %v426
  %551 = vmatprep.subr.mxu0 0.0
  %552 = vmatpush2.msra.mxu0 %v425
  %553 = vmatprep.subr.mxu0 0.0
  %554 = vmatpush2.msra.mxu0 %v424
  %555 = vmatprep.subr.mxu0 0.0
  %556 = vmatpush2.msra.mxu0 %v423
  %557 = vmatprep.subr.mxu0 0.0
  %558 = vmatpush2.msra.mxu0 %v422
  %559 = vmatprep.subr.mxu0 0.0
  %560 = vmatpush2.msra.mxu0 %v421
  %561 = vmatprep.subr.mxu0 0.0
  %562 = vmatpush2.msra.mxu0 %v420
  %563 = vmatprep.subr.mxu0 0.0
  %564 = vmatpush2.msra.mxu0 %v419
  %565 = vmatprep.subr.mxu0 0.0
  %566 = vmatpush2.msra.mxu0 %v418
  %567 = vmatprep.subr.mxu0 0.0
  %568 = vmatpush2.msra.mxu0 %v417
  %569 = vmatprep.subr.mxu0 0.0
  %570 = vmatpush2.msra.mxu0 %v416
  %571 = vmatprep.mubr.f32.mxu0 %v363
  %572 = vmatmul.mubr.f32.gmra.mxu0 %v362
  %v573 = vpop.f32.mrf.mxu0
  %v574 = vadd.f32 %v499, %v573
  %v575 = vpop.f32.mrf.mxu0
  %576 = vmatprep.mubr.f32.mxu0 %v367
  %577 = vmatmul.mubr.f32.gmra.mxu0 %v366
  %v578 = vpop.f32.mrf.mxu0
  %v579 = vadd.f32 %v504, %v578
  %v580 = vpop.f32.mrf.mxu0
  %581 = vdwg.mxu0
  %v582 = vsub.f32 %v14, %v574
  %v583 = vsub.f32 %v15, %v579
  %v584 = vmul.f32 %v582, %v582
  %v585 = vmul.f32 %v583, %v583
  %v586 = vadd.f32 %v584, 1e-06
  %v587 = vadd.f32 %v585, 1e-06
  %v588 = vrsqrt.pop %v586
  %v589 = vmul.f32 %v586, %v588
  %vm590 = vcmp.eq.f32.partialorder %v586, inf
  %v591 = vsel %vm590, %v586, %v589
  %vm592 = vcmp.eq.f32.partialorder %v586, 0.0
  %v593 = vand.u32 %v586, 2147483648
  %v594 = vsel %vm592, %v593, %v591
  %v595 = vrsqrt.pop %v587
  %v596 = vmul.f32 %v587, %v595
  %vm597 = vcmp.eq.f32.partialorder %v587, inf
  %v598 = vsel %vm597, %v587, %v596
  %vm599 = vcmp.eq.f32.partialorder %v587, 0.0
  %v600 = vand.u32 %v587, 2147483648
  %v601 = vsel %vm599, %v600, %v598
  %v602 = vadd.f32 %v594, %v601
  %603 = vst [vmem:[%s3] sm:$0xff] %v602
  // Predicated region
  $region14: #{sobel_edge_loss.1} parent=0 // pred_check
    _
  $region15: #{sobel_edge_loss.1} parent=0 // pred_check_branch
    %605 = sbr.rel (0) target = $region17
  $region16: #{sobel_edge_loss.1} parent=0 // pred_region
    _
  $region17: #{sobel_edge_loss.1} parent=0 // pred_fallthru
    _
  // Predicated region
  $region18: #{sobel_edge_loss.1} parent=0 // pred_check
    _
  $region19: #{sobel_edge_loss.1} parent=0 // pred_check_branch
    %607 = sbr.rel (0) target = $region21
  $region20: #{sobel_edge_loss.1} parent=0 // pred_region
    _
  $region21: #{sobel_edge_loss.1} parent=0 // pred_fallthru
    _

</llo_original>
